<compile_context>
chip_gen: v5e
topology: v5e:2x2
jax: 0.10.0
libtpu: 0.0.40
codegen_flags: <defaults>
</compile_context>

<pallas_src>
import functools

import jax
import jax.numpy as jnp
from jax.experimental import pallas as pl
from jax.experimental.pallas import tpu as pltpu


_LANE = 128
_DEFAULT_VMEM_BYTES = 64 * 1024 * 1024   # conservative fallback (v7x per-core VMEM)


def _round_up(x, m):
    return ((x + m - 1) // m) * m


def _vmem_budgets():
    """Chip-derived (scoped-VMEM limit, tile-size budget) in bytes."""
    cap = None
    try:
        cap = int(pltpu.get_tpu_info().vmem_capacity_bytes)
    except Exception:
        cap = None
    if not cap or cap <= 0:
        cap = _DEFAULT_VMEM_BYTES
    limit = int(cap * 0.80)    # handed to Mosaic; leaves headroom for internal scratch
    budget = int(cap * 0.65)   # what we budget for our own tiles + f32 temporaries
    return limit, budget


# -----------------------------------------------------------------------------
# Kernels
# -----------------------------------------------------------------------------
def _ln_stats(x, eps):
    """Centered x and 1/sqrt(var + eps) over the last dim (rsqrt -> EUP slot)."""
    u = jnp.mean(x, axis=-1, keepdims=True)
    xc = x - u
    s = jnp.mean(xc * xc, axis=-1, keepdims=True)
    return xc, jax.lax.rsqrt(s + eps)


def _ln_kernel(x_ref, w_ref, b_ref, o_ref, *, eps):
    """Plain path: weight/bias are (1, H) parameter rows."""
    x = x_ref[...].astype(jnp.float32)                        # (tm, H)
    xc, inv = _ln_stats(x, eps)
    o_ref[...] = (w_ref[...].astype(jnp.float32) * (xc * inv)
                  + b_ref[...].astype(jnp.float32)).astype(o_ref.dtype)


def _cond_ln_kernel(x_ref, cw_ref, w_ref, b_ref, o_ref, *, eps, h):
    """Conditional path: fused scale/bias MLP, one (tm,H)@(H,2H) MXU matmul."""
    x = x_ref[...].astype(jnp.float32)                        # (tm, H)
    xc, inv = _ln_stats(x, eps)
    xhat = xc * inv
    cw = cw_ref[...].astype(w_ref.dtype)                      # MXU-native dtype
    sb = jnp.dot(cw, w_ref[...], preferred_element_type=jnp.float32)
    sb = sb + b_ref[...].astype(jnp.float32)                  # (tm, 2H)
    o_ref[...] = (sb[:, :h] * xhat + sb[:, h:]).astype(o_ref.dtype)


def _affine_ln_kernel(x_ref, scale_ref, bias_ref, o_ref, *, eps):
    """Fallback path: per-row scale/bias computed outside, streamed in."""
    x = x_ref[...].astype(jnp.float32)
    xc, inv = _ln_stats(x, eps)
    o_ref[...] = (scale_ref[...].astype(jnp.float32) * (xc * inv)
                  + bias_ref[...].astype(jnp.float32)).astype(o_ref.dtype)


# -----------------------------------------------------------------------------
# Parameter packing (do once, outside the hot path)
# -----------------------------------------------------------------------------
def prepare_params(params, hidden_size, *, mlp_dtype=None):
    """Pack the static parameters.

    * weight / bias vectors -> lane-dense (1, H) rows.
    * the two Linear layers are fused into a single (H, 2H) matrix + (1, 2H)
      bias (PyTorch Linear: y = x @ W^T + b, so weights are transposed once).
    * mlp_dtype=jnp.bfloat16 stores the fused MLP MXU-native (2-4x matmul
      throughput, half the resident VMEM footprint) at reduced precision.
    """
    H = hidden_size
    mlp_w = jnp.concatenate([params["weight_mlp_w"].T, params["bias_mlp_w"].T], axis=1)
    mlp_b = jnp.concatenate(
        [params["weight_mlp_b"], params["bias_mlp_b"]]).reshape(1, 2 * H)
    if mlp_dtype is not None:
        mlp_w = mlp_w.astype(mlp_dtype)
        mlp_b = mlp_b.astype(mlp_dtype)
    return {
        "hidden": H,
        "weight": params["weight"].reshape(1, H),
        "bias": params["bias"].reshape(1, H),
        "mlp_w": mlp_w,
        "mlp_b": mlp_b,
    }


# -----------------------------------------------------------------------------
# Wrapper
# -----------------------------------------------------------------------------
def _const_spec(shape):
    """Constant-index operand: its block never changes, so single-buffer it."""
    try:
        return pl.BlockSpec(shape, lambda i: (0, 0), pipeline_mode=pl.Buffered(1))
    except TypeError:  # older JAX without pipeline_mode: fall back to defaults
        return pl.BlockSpec(shape, lambda i: (0, 0))


def _choose_block_rows(n_rows, h, itemsize, n_in_streams, budget_bytes,
                       resident_bytes, row_unit, f32_tmps, prefer_256):
    """Largest row tile fitting the VMEM budget: double-buffered row streams
    (inputs + output), in-kernel f32 temporaries, and any resident weights."""
    h_lane = _round_up(h, _LANE)                               # VMEM footprint per row
    per_row = (n_in_streams + 1) * 2 * h_lane * itemsize       # double-buffered I/O
    per_row += f32_tmps * 4 * h_lane                           # in-kernel f32 temps
    avail = max(budget_bytes - resident_bytes, per_row * 2 * row_unit)
    br = (avail // per_row) // row_unit * row_unit
    br = max(row_unit, min(br, 4096))
    if prefer_256 and br >= 512:
        br = (br // 256) * 256                                 # full MXU M-panels
    br = min(br, _round_up(n_rows, row_unit))                  # don't exceed problem
    steps = pl.cdiv(n_rows, br)
    if steps > 1 and steps % 2 == 1:                           # balance the 2 TCs
        br_even = _round_up(pl.cdiv(n_rows, steps + 1), row_unit)
        if br_even >= row_unit and pl.cdiv(n_rows, br_even) % 2 == 0:
            br = br_even
    return br


def _compiler_params(vmem_limit):
    return pltpu.CompilerParams(dimension_semantics=("parallel",),
                                vmem_limit_bytes=vmem_limit)


def layer_norm(x, prepared, cond_weight=None, *, eps=1e-12, block_rows=None):
    """Matches LayerNorm.forward(x, weight=cond_weight)."""
    H = prepared["hidden"]
    assert x.shape[-1] == H
    orig_shape = x.shape
    x2 = x.reshape(-1, H)
    N = x2.shape[0]

    itemsize = jnp.dtype(x.dtype).itemsize
    row_unit = max(8, 32 // itemsize)    # (8,128) f32 / (16,128) bf16 / (32,128) i8
    vmem_limit, budget = _vmem_budgets()

    if cond_weight is None:
        br = (_choose_block_rows(N, H, itemsize, 1, budget, 0, row_unit, 3, False)
              if block_rows is None else max(row_unit, _round_up(block_rows, row_unit)))
        grid = (pl.cdiv(N, br),)
        row_spec = pl.BlockSpec((br, H), lambda i: (i, 0))
        out2 = pl.pallas_call(
            functools.partial(_ln_kernel, eps=eps),
            out_shape=jax.ShapeDtypeStruct((N, H), x.dtype),
            grid_spec=pltpu.PrefetchScalarGridSpec(
                num_scalar_prefetch=0, grid=grid,
                in_specs=[row_spec, _const_spec((1, H)), _const_spec((1, H))],
                out_specs=row_spec),
            compiler_params=_compiler_params(vmem_limit),
        )(x2, prepared["weight"], prepared["bias"])
        return out2.reshape(orig_shape)

    # ---- conditional path -------------------------------------------------
    cw2 = cond_weight.reshape(-1, H)
    assert cw2.shape[0] == N, "conditional weight must match x row-for-row"
    mlp_w, mlp_b = prepared["mlp_w"], prepared["mlp_b"]
    resident = (mlp_w.size * jnp.dtype(mlp_w.dtype).itemsize
                + mlp_b.size * jnp.dtype(mlp_b.dtype).itemsize)

    if resident <= budget // 2:
        # Fused weight stays VMEM-resident (single-buffered) across the grid.
        br = (_choose_block_rows(N, H, itemsize, 2, budget, resident, row_unit, 6, True)
              if block_rows is None else max(row_unit, _round_up(block_rows, row_unit)))
        grid = (pl.cdiv(N, br),)
        row_spec = pl.BlockSpec((br, H), lambda i: (i, 0))
        out2 = pl.pallas_call(
            functools.partial(_cond_ln_kernel, eps=eps, h=H),
            out_shape=jax.ShapeDtypeStruct((N, H), x.dtype),
            grid_spec=pltpu.PrefetchScalarGridSpec(
                num_scalar_prefetch=0, grid=grid,
                in_specs=[row_spec, row_spec,
                          _const_spec((H, 2 * H)), _const_spec((1, 2 * H))],
                out_specs=row_spec),
            compiler_params=_compiler_params(vmem_limit),
        )(x2, cw2, mlp_w, mlp_b)
        return out2.reshape(orig_shape)

    # Fused weight too large to keep resident (large H on v7x's 64 MiB VMEM):
    # let XLA tile the scale/bias projection, keep LN itself in Pallas.
    # TODO(synk): tile the 2H output dim of mlp_w inside the kernel instead of
    # falling back to an XLA matmul for the projection.
    sb = jnp.dot(cw2, mlp_w, preferred_element_type=jnp.float32) + mlp_b.astype(jnp.float32)
    scale, bias = sb[:, :H], sb[:, H:]
    br = (_choose_block_rows(N, H, 4, 3, budget, 0, row_unit, 3, False)
          if block_rows is None else max(row_unit, _round_up(block_rows, row_unit)))
    grid = (pl.cdiv(N, br),)
    row_spec = pl.BlockSpec((br, H), lambda i: (i, 0))
    out2 = pl.pallas_call(
        functools.partial(_affine_ln_kernel, eps=eps),
        out_shape=jax.ShapeDtypeStruct((N, H), x.dtype),
        grid_spec=pltpu.PrefetchScalarGridSpec(
            num_scalar_prefetch=0, grid=grid,
            in_specs=[row_spec, row_spec, row_spec],
            out_specs=row_spec),
        compiler_params=_compiler_params(vmem_limit),
    )(x2, scale, bias)
    return out2.reshape(orig_shape)


# -----------------------------------------------------------------------------
# Pure-JAX reference (mirrors the PyTorch forward)
# -----------------------------------------------------------------------------
def layer_norm_ref(x, params, cond_weight=None, eps=1e-12):
    u = jnp.mean(x, axis=-1, keepdims=True)
    s = jnp.mean((x - u) ** 2, axis=-1, keepdims=True)
    xhat = (x - u) / jnp.sqrt(s + eps)
    if cond_weight is not None:
        scale = cond_weight @ params["weight_mlp_w"].T + params["weight_mlp_b"]
        bias = cond_weight @ params["bias_mlp_w"].T + params["bias_mlp_b"]
        return scale * xhat + bias
    return params["weight"] * xhat + params["bias"]


# -----------------------------------------------------------------------------
# Main
# -----------------------------------------------------------------------------
if __name__ == "__main__":
    key = jax.random.PRNGKey(0)
    batch, seq, hidden = 2, 8, 32
    eps = 1e-12

    k_x, k_cw, k_wm, k_wmb, k_bm, k_bmb = jax.random.split(key, 6)

    x = jax.random.normal(k_x, (batch, seq, hidden), dtype=jnp.float32)
    cond_w = jax.random.normal(k_cw, (batch, seq, hidden), dtype=jnp.float32)

    # Deterministic parameter init (shapes from the module's __init__).
    bound = 1.0 / jnp.sqrt(hidden)
    params = {
        "weight": jnp.ones((hidden,), jnp.float32),
        "bias": jnp.zeros((hidden,), jnp.float32),
        "weight_mlp_w": jax.random.uniform(k_wm, (hidden, hidden), jnp.float32, -bound, bound),
        "weight_mlp_b": jax.random.uniform(k_wmb, (hidden,), jnp.float32, -bound, bound),
        "bias_mlp_w": jax.random.uniform(k_bm, (hidden, hidden), jnp.float32, -bound, bound),
        "bias_mlp_b": jax.random.uniform(k_bmb, (hidden,), jnp.float32, -bound, bound),
    }

    # One-time packing of the (static) parameters (exact f32 fused MLP).
    prepared = prepare_params(params, hidden)

    # Path 1: weight=None (plain LayerNorm with learned vector scale/bias).
    out_plain = jax.block_until_ready(layer_norm(x, prepared, None, eps=eps))
    ref_plain = layer_norm_ref(x, params, None, eps=eps)
    assert out_plain.shape == x.shape and out_plain.dtype == x.dtype
    assert jnp.allclose(out_plain, ref_plain, atol=2e-5, rtol=2e-5)

    # Path 2: conditional weight -> scale/bias produced by the fused Linear layers.
    out_cond = jax.block_until_ready(layer_norm(x, prepared, cond_w, eps=eps))
    ref_cond = layer_norm_ref(x, params, cond_w, eps=eps)
    assert out_cond.shape == x.shape and out_cond.dtype == x.dtype
    assert jnp.allclose(out_cond, ref_cond, atol=2e-5, rtol=2e-5)

    # Path 2b: MXU-native bf16 packing of the fused MLP (looser tolerance).
    prepared_bf16 = prepare_params(params, hidden, mlp_dtype=jnp.bfloat16)
    out_cond_bf16 = jax.block_until_ready(layer_norm(x, prepared_bf16, cond_w, eps=eps))
    assert out_cond_bf16.shape == x.shape and out_cond_bf16.dtype == x.dtype
    assert jnp.allclose(out_cond_bf16, ref_cond, atol=1e-1, rtol=1e-1)

    print("KERNEL_OK")
</pallas_src>

<mosaic_0001>
module attributes {stable_mosaic.version = 11 : i64} {
  func.func @_ln_kernel(%arg0: i32, %arg1: memref<16x32xf32, #tpu.memory_space<vmem>>, %arg2: memref<1x32xf32, #tpu.memory_space<vmem>>, %arg3: memref<1x32xf32, #tpu.memory_space<vmem>>, %arg4: memref<16x32xf32, #tpu.memory_space<vmem>>) attributes {dimension_semantics = [#tpu.dimension_semantics<parallel>], iteration_bounds = array<i64: 1>, scalar_prefetch = 0 : i64, scratch_operands = 0 : i64, tpu.core_type = #tpu.core_type<tc>, window_params = [{transform_indices = @transform_0, window_bounds = array<i64: 16, 32>}, {pipeline_mode = #tpu.pipeline_mode<synchronous>, transform_indices = @transform_1, window_bounds = array<i64: 1, 32>}, {pipeline_mode = #tpu.pipeline_mode<synchronous>, transform_indices = @transform_2, window_bounds = array<i64: 1, 32>}, {transform_indices = @transform_3, window_bounds = array<i64: 16, 32>}]} {
    %c0 = arith.constant 0 : index
    %c0_0 = arith.constant 0 : index
    %0 = vector.load %arg1[%c0, %c0_0] : memref<16x32xf32, #tpu.memory_space<vmem>>, vector<16x32xf32>
    %cst = arith.constant dense<0.000000e+00> : vector<16xf32>
    %1 = vector.multi_reduction <add>, %0, %cst [1] : vector<16x32xf32> to vector<16xf32>
    %2 = vector.shape_cast %1 : vector<16xf32> to vector<16x1xf32>
    %cst_1 = arith.constant 3.200000e+01 : f32
    %3 = vector.broadcast %cst_1 : f32 to vector<16x1xf32>
    %4 = arith.divf %2, %3 : vector<16x1xf32>
    %5 = vector.broadcast %4 : vector<16x1xf32> to vector<16x32xf32>
    %6 = arith.subf %0, %5 : vector<16x32xf32>
    %7 = arith.mulf %6, %6 : vector<16x32xf32>
    %cst_2 = arith.constant dense<0.000000e+00> : vector<16xf32>
    %8 = vector.multi_reduction <add>, %7, %cst_2 [1] : vector<16x32xf32> to vector<16xf32>
    %9 = vector.shape_cast %8 : vector<16xf32> to vector<16x1xf32>
    %cst_3 = arith.constant 3.200000e+01 : f32
    %10 = vector.broadcast %cst_3 : f32 to vector<16x1xf32>
    %11 = arith.divf %9, %10 : vector<16x1xf32>
    %cst_4 = arith.constant 9.99999996E-13 : f32
    %12 = vector.broadcast %cst_4 : f32 to vector<16x1xf32>
    %13 = arith.addf %11, %12 : vector<16x1xf32>
    %14 = math.rsqrt %13 : vector<16x1xf32>
    %c0_5 = arith.constant 0 : index
    %c0_6 = arith.constant 0 : index
    %15 = vector.load %arg2[%c0_5, %c0_6] : memref<1x32xf32, #tpu.memory_space<vmem>>, vector<1x32xf32>
    %16 = vector.broadcast %14 : vector<16x1xf32> to vector<16x32xf32>
    %17 = arith.mulf %6, %16 : vector<16x32xf32>
    %18 = vector.broadcast %15 : vector<1x32xf32> to vector<16x32xf32>
    %19 = arith.mulf %18, %17 : vector<16x32xf32>
    %c0_7 = arith.constant 0 : index
    %c0_8 = arith.constant 0 : index
    %20 = vector.load %arg3[%c0_7, %c0_8] : memref<1x32xf32, #tpu.memory_space<vmem>>, vector<1x32xf32>
    %21 = vector.broadcast %20 : vector<1x32xf32> to vector<16x32xf32>
    %22 = arith.addf %19, %21 : vector<16x32xf32>
    %c0_9 = arith.constant 0 : index
    %c0_10 = arith.constant 0 : index
    %23 = vector.load %arg4[%c0_9, %c0_10] : memref<16x32xf32, #tpu.memory_space<vmem>>, vector<16x32xf32>
    tpu.vector_store %arg4[%c0_9, %c0_10], %22 {strides = array<i32>} : memref<16x32xf32, #tpu.memory_space<vmem>>, vector<16x32xf32>,
    return
  }
  func.func @transform_0(%arg0: i32) -> (i32, i32) {
    %c0_i32 = arith.constant 0 : i32
    %c0_i32_0 = arith.constant 0 : i32
    return %arg0, %c0_i32 : i32, i32
  }
  func.func @transform_1(%arg0: i32) -> (i32, i32) {
    %c0_i32 = arith.constant 0 : i32
    %c0_i32_0 = arith.constant 0 : i32
    %c0_i32_1 = arith.constant 0 : i32
    return %c0_i32, %c0_i32_0 : i32, i32
  }
  func.func @transform_2(%arg0: i32) -> (i32, i32) {
    %c0_i32 = arith.constant 0 : i32
    %c0_i32_0 = arith.constant 0 : i32
    %c0_i32_1 = arith.constant 0 : i32
    return %c0_i32, %c0_i32_0 : i32, i32
  }
  func.func @transform_3(%arg0: i32) -> (i32, i32) {
    %c0_i32 = arith.constant 0 : i32
    %c0_i32_0 = arith.constant 0 : i32
    return %arg0, %c0_i32 : i32, i32
  }
}

</mosaic_0001>

<llo_original>
// kernel: tpu_custom_call.1
$region0: #{tpu_custom_call.1}
  #allocation0 [shape = 'u32[]', space=smem, size = 0x4, offset = 0x4, fixed_abs, tag = 'smem constant byte address 0x4 - core index']
  #allocation1 [shape = 'u32[72,128]{1,0:T(1,128)}', space=vmem, size = 0x9000, scoped, tag = 'internal scratch']
  %s0 = inlined_call_operand.hbm [shape: f32[16,32], index: 0, kind: input, shape index: {}]
  %s1 = inlined_call_operand.hbm [shape: f32[1,32], index: 1, kind: input, shape index: {}]
  %s2 = inlined_call_operand.vmem [shape: f32[1,32], index: 2, kind: input, shape index: {}]
  %s3 = inlined_call_operand.hbm [shape: f32[16,32], index: 3, kind: output, shape index: {}]
  %s4 = sld [smem:[#allocation0]]
  $region30: #{tpu_custom_call.1} parent=0
    _
  %s6 = ssub.s32 1, %s4
  %s7 = scalar_select 0, %s6, %s4
  $region1: #{tpu_custom_call.1} parent=0
    #allocation2 [shape = 'u8[8192]{0}', space=vmem, size = 0x2000, scoped, tag = 'input window, operand 0, single buffered']
    #allocation3 [shape = 's32[1]{0}', space=sflag, size = 0x4, scoped, tag = 'scoped memory for tpu_custom_call.1']
    #allocation4 [shape = 's32[1]{0}', space=sflag, size = 0x4, scoped, tag = 'scoped memory for tpu_custom_call.1']
    #allocation5 [shape = 'u8[512]{0}', space=vmem, size = 0x400, scoped, tag = 'input window, operand 1, single buffered']
    #allocation6 [shape = 's32[1]{0}', space=sflag, size = 0x4, scoped, tag = 'scoped memory for tpu_custom_call.1']
    #allocation7 [shape = 'u8[8192]{0}', space=vmem, size = 0x2000, scoped, tag = 'output window, operand 0, single buffered']
    %8 = vsyncpa [#allocation3], 0
    %9 = vsyncpa [#allocation6], 0
    %10 = vsyncpa [#allocation4], 0
    // Predicated region
    $region2: #{tpu_custom_call.1} parent=1 // pred_check
      _
    $region3: #{tpu_custom_call.1} parent=1 // pred_check_branch
      %12 = sbr.rel (0) target = $region5
    $region4: #{tpu_custom_call.1} parent=1 // pred_region
      %14 = vsyncadd [#allocation3], 0
      %s15 = sshll.u32 %s0, 4
      %s16 = int_to_ptr.hbm [resolvable:$true] %s15
      %s17 = sshll.u32 [#allocation2], 4
      %s18 = int_to_ptr.vmem [resolvable:$true] %s17
      %23 = dma.hbm_to_vmem [thread:$0]  %s16, 256, %s18, [#allocation3], 128, 128, 8
    $region5: #{tpu_custom_call.1} parent=1 // pred_fallthru
      _
    // Predicated region
    $region6: #{tpu_custom_call.1} parent=1 // pred_check
      _
    $region7: #{tpu_custom_call.1} parent=1 // pred_check_branch
      %25 = sbr.rel (0) target = $region9
    $region8: #{tpu_custom_call.1} parent=1 // pred_region
      %27 = vsyncadd [#allocation6], 0
      %s29 = sshll.u32 %s1, 4
      %s30 = int_to_ptr.hbm [resolvable:$true] %s29
      %s31 = sshll.u32 [#allocation5], 4
      %s32 = int_to_ptr.vmem [resolvable:$true] %s31
      %34 = dma.hbm_to_vmem [thread:$0]  %s30, 16, %s32, [#allocation6]
    $region9: #{tpu_custom_call.1} parent=1 // pred_fallthru
      _
    // Predicated region
    $region10: #{tpu_custom_call.1} parent=1 // pred_check
      _
    $region11: #{tpu_custom_call.1} parent=1 // pred_check_branch
      %36 = sbr.rel (0) target = $region13
    $region12: #{tpu_custom_call.1} parent=1 // pred_region
      _
    $region13: #{tpu_custom_call.1} parent=1 // pred_fallthru
      _
    // Predicated region
    $region14: #{tpu_custom_call.1} parent=1 // pred_check
      _
    $region15: #{tpu_custom_call.1} parent=1 // pred_check_branch
      %38 = sbr.rel (0) target = $region17
    $region16: #{tpu_custom_call.1} parent=1 // pred_region
      %40 = dma.done [#allocation3], 256
    $region17: #{tpu_custom_call.1} parent=1 // pred_fallthru
      _
    // Predicated region
    $region18: #{tpu_custom_call.1} parent=1 // pred_check
      _
    $region19: #{tpu_custom_call.1} parent=1 // pred_check_branch
      %42 = sbr.rel (0) target = $region21
    $region20: #{tpu_custom_call.1} parent=1 // pred_region
      %44 = dma.done [#allocation6], 16
    $region21: #{tpu_custom_call.1} parent=1 // pred_fallthru
      _
    %v45 = vld [vmem:[#allocation2] sm:$0xff]
    %v46 = vld [vmem:[#allocation2 + $0x8] sm:$0xff]
    %vm47 = vcmask 261120
    %v48 = vsel %vm47, %v45, 0.0
    %49 = vadd.xlane.f32.xlu0 %v48
    %v50 = vpop.xlane.xlu0 %49
    %v51 = vsel %vm47, %v46, 0.0
    %52 = vadd.xlane.f32.xlu0 %v51
    %v53 = vpop.xlane.xlu0 %52
    %v54 = vrcp.pop 32.0
    %v55 = vmul.f32 32.0, %v54
    %v56 = vsub.f32 1.0, %v55
    %v57 = vmul.f32 %v54, %v56
    %v58 = vadd.f32 %v54, %v57
    %vm59 = vweird.f32 %v54
    %v60 = vsel %vm59, %v54, %v58
    %v61 = vmul.f32 %v50, %v60
    %v62 = vmul.f32 %v53, %v60
    %v63 = vsub.f32 %v45, %v61
    %v64 = vsub.f32 %v46, %v62
    %v65 = vmul.f32 %v63, %v63
    %v66 = vmul.f32 %v64, %v64
    %v67 = vsel %vm47, %v65, 0.0
    %68 = vadd.xlane.f32.xlu0 %v67
    %v69 = vpop.xlane.xlu0 %68
    %v70 = vsel %vm47, %v66, 0.0
    %71 = vadd.xlane.f32.xlu0 %v70
    %v72 = vpop.xlane.xlu0 %71
    %v73 = vmul.f32 %v69, %v60
    %v74 = vmul.f32 %v72, %v60
    %v75 = vadd.f32 %v73, 1e-12
    %v76 = vadd.f32 %v74, 1e-12
    %v77 = vrsqrt.pop %v75
    %v78 = vmul.f32 %v77, %v75
    %v79 = vmul.f32 %v78, %v77
    %v80 = vmul.f32 0.5, %v79
    %v81 = vsub.f32 1.5, %v80
    %v82 = vmul.f32 %v77, %v81
    %vm83 = vweird.f32 %v75
    %vm84 = vweird.f32 %v77
    %vm85 = vmor %vm83, %vm84
    %v86 = vsel %vm85, %v77, %v82
    %v87 = vrsqrt.pop %v76
    %v88 = vmul.f32 %v87, %v76
    %v89 = vmul.f32 %v88, %v87
    %v90 = vmul.f32 0.5, %v89
    %v91 = vsub.f32 1.5, %v90
    %v92 = vmul.f32 %v87, %v91
    %vm93 = vweird.f32 %v76
    %vm94 = vweird.f32 %v87
    %vm95 = vmor %vm93, %vm94
    %v96 = vsel %vm95, %v87, %v92
    %v97 = vld [vmem:[#allocation5] sm:$0x1]
    %v98 = vmul.f32 %v63, %v86
    %v99 = vmul.f32 %v64, %v96
    %v101 = vperm.slane %v97, 0
    %v103 = vmul.f32 %v101, %v98
    %v104 = vmul.f32 %v101, %v99
    %v105 = vld [vmem:[%s2] sm:$0x1]
    %v107 = vperm.slane %v105, 0
    %v109 = vadd.f32 %v103, %v107
    %v110 = vadd.f32 %v104, %v107
    %111 = vst.msk [vmem:[#allocation7] sm:$0xff] %vm47, %v109
    %112 = vst.msk [vmem:[#allocation7 + $0x8] sm:$0xff] %vm47, %v110
    // Predicated region
    $region22: #{tpu_custom_call.1} parent=1 // pred_check
      _
    $region23: #{tpu_custom_call.1} parent=1 // pred_check_branch
      %114 = sbr.rel (0) target = $region25
    $region24: #{tpu_custom_call.1} parent=1 // pred_region
      %116 = vsyncadd [#allocation4], 0
      %s117 = sshll.u32 [#allocation7], 4
      %s118 = int_to_ptr.vmem [resolvable:$true] %s117
      %s119 = sshll.u32 %s3, 4
      %s120 = int_to_ptr.hbm [resolvable:$true] %s119
      %125 = dma.vmem_to_hbm [thread:$0]  %s118, 256, %s120, [#allocation4], 128, 128, 8
    $region25: #{tpu_custom_call.1} parent=1 // pred_fallthru
      _
    // Predicated region
    $region26: #{tpu_custom_call.1} parent=1 // pred_check
      _
    $region27: #{tpu_custom_call.1} parent=1 // pred_check_branch
      %127 = sbr.rel (0) target = $region29
    $region28: #{tpu_custom_call.1} parent=1 // pred_region
      %129 = dma.done [#allocation4], 256
    $region29: #{tpu_custom_call.1} parent=1 // pred_fallthru
      _
    %130 = vsyncpa [#allocation3], 1
    %131 = vsyncpa [#allocation6], 1
    %132 = vsyncpa [#allocation4], 1

</llo_original>
